<compile_context>
chip_gen: v6e
topology: v6e:2x2x1
jax: 0.10.0
libtpu: 0.0.40
codegen_flags: <defaults>
</compile_context>

<pallas_src>
import functools

import jax
import jax.numpy as jnp
import numpy as np
from jax.experimental import pallas as pl
from jax.experimental.pallas import tpu as pltpu


def _round_up(v: int, m: int) -> int:
    return ((v + m - 1) // m) * m


def _multilora_kernel(perm_ref, sids_ref, x_ref, b_ref, a_ref, o_ref):
    # perm_ref / sids_ref: SMEM scalar-prefetch (consumed only by index_maps).
    # x_ref: VMEM (1, TS, Fin)   x.dtype (cast to bf16 in-kernel)
    # b_ref: VMEM (1, Fin, Rp)   bf16   (selected adapter, pre-transposed)
    # a_ref: VMEM (1, Rp, Fout)  bf16   (selected adapter, scale folded in)
    # o_ref: VMEM (1, TS, Fout)  out_dtype (bf16 by default)
    del perm_ref, sids_ref
    x = x_ref[0].astype(jnp.bfloat16)                                # (TS, Fin)
    Bm = b_ref[0]                                                    # (Fin, Rp)
    Am = a_ref[0]                                                    # (Rp, Fout)

    tmp = jnp.dot(x, Bm, preferred_element_type=jnp.float32)        # (TS, Rp)
    out = jnp.dot(tmp.astype(jnp.bfloat16), Am,
                  preferred_element_type=jnp.float32)                # (TS, Fout)
    o_ref[0] = out.astype(o_ref.dtype)


def prepare_multilora_weights(A_stack, B_stack, scaling):
    """One-time adapter-bank preprocessing (hoisted out of the forward path).

    A_stack: (nA, Fout, rmax); B_stack: (nA, rmax, Fin); scaling: (nA,) f32.
    Returns (B_t, A_t): (nA, Fin, Rp) / (nA, Rp, Fout) in bf16, with the rank
    dim zero-padded to a multiple of 128 and the per-adapter scaling folded
    into A_t (exact: scaling is a linear per-adapter constant).
    """
    n_adapters, fout, rmax = A_stack.shape
    r_p = _round_up(max(rmax, 1), 128)
    B_t = jnp.swapaxes(B_stack, 1, 2)                                # (nA, Fin, rmax)
    A_t = jnp.swapaxes(A_stack, 1, 2) * scaling[:, None, None]       # (nA, rmax, Fout)
    B_t = jnp.pad(B_t, ((0, 0), (0, 0), (0, r_p - rmax))).astype(jnp.bfloat16)
    A_t = jnp.pad(A_t, ((0, 0), (0, r_p - rmax), (0, 0))).astype(jnp.bfloat16)
    return B_t, A_t


@functools.partial(jax.jit, static_argnames=("out_dtype", "max_seq_tile"))
def multilora_forward(x, adapter_ids, B_t, A_t,
                      out_dtype=jnp.bfloat16, max_seq_tile=512):
    """x: (B, S, Fin) (f32 or bf16 — passing bf16 halves kernel HBM traffic);
    adapter_ids: (B,) int; B_t/A_t from prepare_multilora_weights()."""
    batch, seq, fin = x.shape
    n_adapters, fin_w, r_p = B_t.shape
    fout = A_t.shape[-1]
    assert fin_w == fin, "B_t feature dim must match x"

    # VMEM-aware seq tile: keep the double-buffered x/out blocks under ~32 MiB
    # so the whole pipeline fits the explicit 48 MiB limit (v7x physical 64 MiB).
    x_bytes = np.dtype(x.dtype).itemsize
    o_bytes = np.dtype(out_dtype).itemsize
    seq_tile = max_seq_tile
    while (seq_tile > 32 and
           2 * seq_tile * (fin * x_bytes + fout * o_bytes) > 32 * 1024 * 1024):
        seq_tile //= 2
    if seq <= seq_tile:
        seq_tile = seq                      # full-extent block: no seq padding
    n_seq_tiles = pl.cdiv(seq, seq_tile)    # partial last block handled by Pallas

    # Adapter-sorted visit order applied purely through the index_map (no data
    # movement of x): consecutive grid steps sharing an adapter reuse resident
    # A/B blocks. Clamp ids so a bad id can't drive an out-of-range block DMA.
    ids32 = jnp.clip(adapter_ids.astype(jnp.int32), 0, n_adapters - 1)
    perm = jnp.argsort(ids32).astype(jnp.int32)       # visit order over batches
    sorted_ids = ids32[perm]                          # adapter per visited batch

    grid_spec = pltpu.PrefetchScalarGridSpec(
        num_scalar_prefetch=2,
        grid=(batch, n_seq_tiles),
        in_specs=[
            pl.BlockSpec((1, seq_tile, fin),
                         lambda b, s, p_ref, i_ref: (p_ref[b], s, 0)),
            pl.BlockSpec((1, fin, r_p),
                         lambda b, s, p_ref, i_ref: (i_ref[b], 0, 0)),
            pl.BlockSpec((1, r_p, fout),
                         lambda b, s, p_ref, i_ref: (i_ref[b], 0, 0)),
        ],
        out_specs=pl.BlockSpec((1, seq_tile, fout),
                               lambda b, s, p_ref, i_ref: (p_ref[b], s, 0)),
    )

    return pl.pallas_call(
        _multilora_kernel,
        out_shape=jax.ShapeDtypeStruct((batch, seq, fout), out_dtype),
        grid_spec=grid_spec,
        compiler_params=pltpu.CompilerParams(
            dimension_semantics=("parallel", "parallel"),
            vmem_limit_bytes=48 * 1024 * 1024),
    )(perm, sorted_ids, x, B_t, A_t)


def multilora_reference(x, adapter_ids, A_list, B_list, scalings):
    """Pure-JAX f32 reference mirroring the PyTorch per-adapter loop."""
    batch, seq, fin = x.shape
    fout = A_list[0].shape[0]
    result = jnp.zeros((batch, seq, fout), dtype=jnp.float32)
    for a in range(len(A_list)):
        out_a = jnp.einsum("bsf,rf->bsr", x, B_list[a])
        out_a = jnp.einsum("bsr,or->bso", out_a, A_list[a]) * scalings[a]
        mask = (adapter_ids == a)[:, None, None]
        result = jnp.where(mask, out_a, result)
    return result


if __name__ == "__main__":
    # Small shapes consistent with the module's forward.
    batch, seq = 4, 8
    in_features, out_features = 32, 32
    ranks = [4, 8]                      # per-adapter ranks
    alpha = 1.0
    rmax = max(ranks)
    n_adapters = len(ranks)

    key = jax.random.PRNGKey(0)
    kx, *kparams = jax.random.split(key, 1 + 2 * n_adapters)

    x = jax.random.normal(kx, (batch, seq, in_features), dtype=jnp.float32)
    adapter_ids = jnp.array([0, 1, 1, 0], dtype=jnp.int32)

    # Deterministic parameter init (torch init has B=zeros; use random here
    # so the kernel computes something non-trivial).
    A_list, B_list, scalings = [], [], []
    for i, r in enumerate(ranks):
        A_list.append(jax.random.normal(
            kparams[2 * i], (out_features, r), dtype=jnp.float32) * 0.02)
        B_list.append(jax.random.normal(
            kparams[2 * i + 1], (r, in_features), dtype=jnp.float32) * 0.02)
        scalings.append(alpha / r)

    # Zero-pad every adapter to rank_max and stack (padding contributes 0).
    A_stack = jnp.stack([
        jnp.pad(A, ((0, 0), (0, rmax - A.shape[1]))) for A in A_list])
    B_stack = jnp.stack([
        jnp.pad(B, ((0, rmax - B.shape[0]), (0, 0))) for B in B_list])
    scaling = jnp.array(scalings, dtype=jnp.float32)

    # One-time weight prep (static across forwards; not re-done per call).
    B_t, A_t = prepare_multilora_weights(A_stack, B_stack, scaling)

    out = multilora_forward(x, adapter_ids, B_t, A_t,
                            out_dtype=jnp.bfloat16, max_seq_tile=512)
    out = jax.block_until_ready(out)

    ref = multilora_reference(x, adapter_ids, A_list, B_list, scalings)
    assert out.shape == (batch, seq, out_features)
    # bf16 inputs/output with f32 MXU accumulation: tolerance sized to catch an
    # adapter/scaling mix-up (errors ~5e-4..1e-3 at these magnitudes) while
    # passing bf16 rounding noise (~1e-5).
    assert jnp.allclose(out.astype(jnp.float32), ref, atol=1e-4, rtol=2e-2), \
        "mismatch vs reference"

    print("KERNEL_OK")
</pallas_src>

<mosaic_0001>
module attributes {stable_mosaic.version = 11 : i64} {
  func.func @_multilora_kernel(%arg0: i32, %arg1: i32, %arg2: memref<4xi32, #tpu.memory_space<smem>>, %arg3: memref<4xi32, #tpu.memory_space<smem>>, %arg4: memref<1x8x32xf32, #tpu.memory_space<vmem>>, %arg5: memref<1x32x128xbf16, #tpu.memory_space<vmem>>, %arg6: memref<1x128x32xbf16, #tpu.memory_space<vmem>>, %arg7: memref<1x8x32xbf16, #tpu.memory_space<vmem>>) attributes {dimension_semantics = [#tpu.dimension_semantics<parallel>, #tpu.dimension_semantics<parallel>], iteration_bounds = array<i64: 4, 1>, scalar_prefetch = 2 : i64, scratch_operands = 0 : i64, tpu.core_type = #tpu.core_type<tc>, window_params = [{transform_indices = @transform_0, window_bounds = array<i64: 1, 8, 32>}, {transform_indices = @transform_1, window_bounds = array<i64: 1, 32, 128>}, {transform_indices = @transform_2, window_bounds = array<i64: 1, 128, 32>}, {transform_indices = @transform_3, window_bounds = array<i64: 1, 8, 32>}]} {
    %c0 = arith.constant 0 : index
    %c0_0 = arith.constant 0 : index
    %c0_1 = arith.constant 0 : index
    %0 = vector.load %arg4[%c0, %c0_0, %c0_1] : memref<1x8x32xf32, #tpu.memory_space<vmem>>, vector<1x8x32xf32>
    %1 = vector.shape_cast %0 : vector<1x8x32xf32> to vector<8x32xf32>
    %2 = arith.truncf %1 : vector<8x32xf32> to vector<8x32xbf16>
    %c0_2 = arith.constant 0 : index
    %c0_3 = arith.constant 0 : index
    %c0_4 = arith.constant 0 : index
    %3 = vector.load %arg5[%c0_2, %c0_3, %c0_4] : memref<1x32x128xbf16, #tpu.memory_space<vmem>>, vector<1x32x128xbf16>
    %4 = vector.shape_cast %3 : vector<1x32x128xbf16> to vector<32x128xbf16>
    %c0_5 = arith.constant 0 : index
    %c0_6 = arith.constant 0 : index
    %c0_7 = arith.constant 0 : index
    %5 = vector.load %arg6[%c0_5, %c0_6, %c0_7] : memref<1x128x32xbf16, #tpu.memory_space<vmem>>, vector<1x128x32xbf16>
    %6 = vector.shape_cast %5 : vector<1x128x32xbf16> to vector<128x32xbf16>
    %cst = arith.constant dense<0.000000e+00> : vector<8x128xf32>
    %7 = tpu.matmul %2, %4, %cst {dimension_numbers = #tpu.dot_dimension_numbers<[1], [0], [0], [1], [0, 0, 1, 1], [], []>} : vector<8x32xbf16>, vector<32x128xbf16>, vector<8x128xf32> -> vector<8x128xf32>
    %8 = arith.truncf %7 : vector<8x128xf32> to vector<8x128xbf16>
    %cst_8 = arith.constant dense<0.000000e+00> : vector<8x32xf32>
    %9 = tpu.matmul %8, %6, %cst_8 {dimension_numbers = #tpu.dot_dimension_numbers<[1], [0], [0], [1], [0, 0, 1, 1], [], []>} : vector<8x128xbf16>, vector<128x32xbf16>, vector<8x32xf32> -> vector<8x32xf32>
    %10 = arith.truncf %9 : vector<8x32xf32> to vector<8x32xbf16>
    %c0_9 = arith.constant 0 : index
    %c0_10 = arith.constant 0 : index
    %c0_11 = arith.constant 0 : index
    %11 = vector.load %arg7[%c0_9, %c0_10, %c0_11] : memref<1x8x32xbf16, #tpu.memory_space<vmem>>, vector<1x8x32xbf16>
    %12 = vector.shape_cast %11 : vector<1x8x32xbf16> to vector<8x32xbf16>
    %13 = vector.shape_cast %10 : vector<8x32xbf16> to vector<1x8x32xbf16>
    tpu.vector_store %arg7[%c0_9, %c0_10, %c0_11], %13 {strides = array<i32>} : memref<1x8x32xbf16, #tpu.memory_space<vmem>>, vector<1x8x32xbf16>,
    return
  }
  func.func @transform_0(%arg0: i32, %arg1: i32, %arg2: memref<4xi32, #tpu.memory_space<smem>>, %arg3: memref<4xi32, #tpu.memory_space<smem>>) -> (i32, i32, i32) {
    %0 = arith.index_cast %arg0 : i32 to index
    %1 = memref.load %arg2[%0] : memref<4xi32, #tpu.memory_space<smem>>
    %c0_i32 = arith.constant 0 : i32
    %c0_i32_0 = arith.constant 0 : i32
    return %1, %arg1, %c0_i32 : i32, i32, i32
  }
  func.func @transform_1(%arg0: i32, %arg1: i32, %arg2: memref<4xi32, #tpu.memory_space<smem>>, %arg3: memref<4xi32, #tpu.memory_space<smem>>) -> (i32, i32, i32) {
    %0 = arith.index_cast %arg0 : i32 to index
    %1 = memref.load %arg3[%0] : memref<4xi32, #tpu.memory_space<smem>>
    %c0_i32 = arith.constant 0 : i32
    %c0_i32_0 = arith.constant 0 : i32
    %c0_i32_1 = arith.constant 0 : i32
    return %1, %c0_i32, %c0_i32_0 : i32, i32, i32
  }
  func.func @transform_2(%arg0: i32, %arg1: i32, %arg2: memref<4xi32, #tpu.memory_space<smem>>, %arg3: memref<4xi32, #tpu.memory_space<smem>>) -> (i32, i32, i32) {
    %0 = arith.index_cast %arg0 : i32 to index
    %1 = memref.load %arg3[%0] : memref<4xi32, #tpu.memory_space<smem>>
    %c0_i32 = arith.constant 0 : i32
    %c0_i32_0 = arith.constant 0 : i32
    %c0_i32_1 = arith.constant 0 : i32
    return %1, %c0_i32, %c0_i32_0 : i32, i32, i32
  }
  func.func @transform_3(%arg0: i32, %arg1: i32, %arg2: memref<4xi32, #tpu.memory_space<smem>>, %arg3: memref<4xi32, #tpu.memory_space<smem>>) -> (i32, i32, i32) {
    %0 = arith.index_cast %arg0 : i32 to index
    %1 = memref.load %arg2[%0] : memref<4xi32, #tpu.memory_space<smem>>
    %c0_i32 = arith.constant 0 : i32
    %c0_i32_0 = arith.constant 0 : i32
    return %1, %arg1, %c0_i32 : i32, i32, i32
  }
}

</mosaic_0001>

<llo_original>
// kernel: multilora_forward.1
$region0: #{multilora_forward.1}
  #allocation0 [shape = 'u32[]', space=smem, size = 0x4, offset = 0x4, fixed_abs, tag = 'smem constant byte address 0x4 - core index']
  #allocation1 [shape = 'u32[144,128]{1,0:T(1,128)}', space=vmem, size = 0x12000, scoped, tag = 'internal scratch']
  #allocation2 [shape = 's32[1]{0}', space=sflag, size = 0x4, scoped, tag = 'scoped memory for multilora_forward.1']
  #allocation3 [shape = 'u8[512]{0}', space=smem, size = 0x200, scoped, tag = 'prefetched SMEM operand 0']
  #allocation4 [shape = 'u8[512]{0}', space=smem, size = 0x200, scoped, tag = 'prefetched SMEM operand 1']
  %s0 = inlined_call_operand.vmem [shape: s32[4], index: 0, kind: input, shape index: {}]
  %s1 = inlined_call_operand.vmem [shape: s32[4], index: 1, kind: input, shape index: {}]
  %s2 = inlined_call_operand.vmem [shape: f32[4,8,32], index: 2, kind: input, shape index: {}]
  %s3 = inlined_call_operand.vmem [shape: bf16[2,32,128], index: 3, kind: input, shape index: {}]
  %s4 = inlined_call_operand.vmem [shape: bf16[2,128,32], index: 4, kind: input, shape index: {}]
  %s5 = inlined_call_operand.hbm [shape: bf16[4,8,32], index: 5, kind: output, shape index: {}]
  %s6 = sld [smem:[#allocation0]]
  $region45: #{multilora_forward.1} parent=0
    _
  %s8 = ssub.s32 1, %s6
  %s9 = scalar_select 0, %s8, %s6
  %s10 = sshll.u32 %s0, 4
  %s11 = int_to_ptr.vmem [resolvable:$true] %s10
  %13 = dma.vmem_to_smem %s11, 16, [#allocation3], [#allocation2]
  %s14 = sshll.u32 %s1, 4
  %s15 = int_to_ptr.vmem [resolvable:$true] %s14
  %17 = dma.vmem_to_smem %s15, 16, [#allocation4], [#allocation2]
  %18 = dma.done [#allocation2], 32
  %19 = sfence
  $region1: #{multilora_forward.1} parent=0
    #allocation5 [shape = 'u8[4096]{0}', space=vmem, size = 0x1000, scoped, tag = 'output window, operand 0']
    #allocation6 [shape = 's32[2]{0}', space=sflag, size = 0x8, scoped, tag = 'scoped memory for multilora_forward.1']
    %20 = vsyncpa [#allocation6], 0
    %s21 = scalar_lea.sflag [#allocation6], 1
    %22 = vsyncpa %s21, 0
    loop: start=0, step=1, limit=6
    $region2: #{multilora_forward.1} parent=1 // loop_pre_header
      _
    $region3: #{multilora_forward.1} parent=1 // loop_header
      %s24 = sphi 0, %s28
      %p25 = scmp.ge.s32.totalorder %s24, 6
      %s31 = sphi 0, %s43
      %s32 = sphi 0, %s39
      %s33 = sphi 0, %s31
      %s34 = sphi 0, %s32
      %s35 = sphi 0, %s33
      %s36 = sphi 0, %s34
      %s50 = sphi 0, %s52
      %s53 = sphi 0, %s50
      %s54 = sphi 0, %s53
      %s70 = sphi 0, %s54
      %s78 = sphi 0, %s80
      %s81 = sphi 0, %s78
      %s82 = sphi 0, %s81
      %s98 = sphi 0, %s82
      %s106 = sphi 0, %s108
      %s109 = sphi 0, %s106
      %s110 = sphi 0, %s109
      %s126 = sphi 0, %s110
      %s136 = sphi 0, %s138
      %s139 = sphi 0, %s136
      %s140 = sphi 0, %s139
      %s156 = sphi 0, %s140
    $region4: #{multilora_forward.1} parent=1 // loop_header_branch
      %27 = sbr.rel (%p25) target = $region8
    $region5: #{multilora_forward.1} parent=1 // loop_body
      %s29 = ssub.s32 %s24, 1
      %s30 = ssub.s32 %s24, 2
      %s37 = sadd.s32 1, %s32
      %p38 = scmp.ge.s32.totalorder %s37, 1
      %s39 = scalar_select %p38, 0, %s37
      %s40 = sadd.s32 1, %s31
      %s41 = scalar_select %p38, %s40, %s31
      %p42 = scmp.ge.s32.totalorder %s41, 4
      %s43 = scalar_select %p42, 0, %s41
      %s44 = sld [smem:[#allocation3 + %s31]]
      %s45 = sld [smem:[#allocation3 + %s43]]
      %s46 = ssub.s32 %s44, %s45
      %s47 = ssub.s32 %s32, %s39
      %s48 = sor.u32 %s46, %s47
      %p49 = scmp.eq.s32.totalorder %s48, 0
      %s51 = sadd.s32 %s50, 1
      %s52 = scalar_select %p49, %s50, %s51
      %p55 = pneg %p49
      %p56 = scmp.eq.s32.totalorder %s24, 3
      %p57 = por %p55, %p56
      %p58 = scmp.ne.s32.totalorder %s50, %s53
      %p59 = scmp.eq.s32.totalorder %s24, 0
      %p60 = por %p58, %p59
      %p61 = scmp.ne.s32.totalorder %s50, %s53
      %p62 = scmp.eq.s32.totalorder %s29, 3
      %p63 = por %p61, %p62
      %p64 = scmp.ne.s32.totalorder %s53, %s54
      %p65 = scmp.eq.s32.totalorder %s29, 0
      %p66 = por %p64, %p65
      %p67 = scmp.ne.s32.totalorder %s53, %s54
      %p68 = scmp.eq.s32.totalorder %s30, 3
      %p69 = por %p67, %p68
      %p71 = scmp.ne.s32.totalorder %s54, %s70
      %p72 = scmp.eq.s32.totalorder %s30, 0
      %p73 = por %p71, %p72
      %s74 = sld [smem:[#allocation4 + %s31]]
      %s75 = sld [smem:[#allocation4 + %s43]]
      %s76 = ssub.s32 %s74, %s75
      %p77 = scmp.eq.s32.totalorder %s76, 0
      %s79 = sadd.s32 %s78, 1
      %s80 = scalar_select %p77, %s78, %s79
      %p83 = pneg %p77
      %p84 = scmp.eq.s32.totalorder %s24, 3
      %p85 = por %p83, %p84
      %p86 = scmp.ne.s32.totalorder %s78, %s81
      %p87 = scmp.eq.s32.totalorder %s24, 0
      %p88 = por %p86, %p87
      %p89 = scmp.ne.s32.totalorder %s78, %s81
      %p90 = scmp.eq.s32.totalorder %s29, 3
      %p91 = por %p89, %p90
      %p92 = scmp.ne.s32.totalorder %s81, %s82
      %p93 = scmp.eq.s32.totalorder %s29, 0
      %p94 = por %p92, %p93
      %p95 = scmp.ne.s32.totalorder %s81, %s82
      %p96 = scmp.eq.s32.totalorder %s30, 3
      %p97 = por %p95, %p96
      %p99 = scmp.ne.s32.totalorder %s82, %s98
      %p100 = scmp.eq.s32.totalorder %s30, 0
      %p101 = por %p99, %p100
      %s102 = sld [smem:[#allocation4 + %s31]]
      %s103 = sld [smem:[#allocation4 + %s43]]
      %s104 = ssub.s32 %s102, %s103
      %p105 = scmp.eq.s32.totalorder %s104, 0
      %s107 = sadd.s32 %s106, 1
      %s108 = scalar_select %p105, %s106, %s107
      %p111 = pneg %p105
      %p112 = scmp.eq.s32.totalorder %s24, 3
      %p113 = por %p111, %p112
      %p114 = scmp.ne.s32.totalorder %s106, %s109
      %p115 = scmp.eq.s32.totalorder %s24, 0
      %p116 = por %p114, %p115
      %p117 = scmp.ne.s32.totalorder %s106, %s109
      %p118 = scmp.eq.s32.totalorder %s29, 3
      %p119 = por %p117, %p118
      %p120 = scmp.ne.s32.totalorder %s109, %s110
      %p121 = scmp.eq.s32.totalorder %s29, 0
      %p122 = por %p120, %p121
      %p123 = scmp.ne.s32.totalorder %s109, %s110
      %p124 = scmp.eq.s32.totalorder %s30, 3
      %p125 = por %p123, %p124
      %p127 = scmp.ne.s32.totalorder %s110, %s126
      %p128 = scmp.eq.s32.totalorder %s30, 0
      %p129 = por %p127, %p128
      %s130 = sld [smem:[#allocation3 + %s31]]
      %s131 = sld [smem:[#allocation3 + %s43]]
      %s132 = ssub.s32 %s130, %s131
      %s133 = ssub.s32 %s32, %s39
      %s134 = sor.u32 %s132, %s133
      %p135 = scmp.eq.s32.totalorder %s134, 0
      %s137 = sadd.s32 %s136, 1
      %s138 = scalar_select %p135, %s136, %s137
      %p141 = pneg %p135
      %p142 = scmp.eq.s32.totalorder %s24, 3
      %p143 = por %p141, %p142
      %p144 = scmp.ne.s32.totalorder %s136, %s139
      %p145 = scmp.eq.s32.totalorder %s24, 0
      %p146 = por %p144, %p145
      %p147 = scmp.ne.s32.totalorder %s136, %s139
      %p148 = scmp.eq.s32.totalorder %s29, 3
      %p149 = por %p147, %p148
      %p150 = scmp.ne.s32.totalorder %s139, %s140
      %p151 = scmp.eq.s32.totalorder %s29, 0
      %p152 = por %p150, %p151
      %p153 = scmp.ne.s32.totalorder %s139, %s140
      %p154 = scmp.eq.s32.totalorder %s30, 3
      %p155 = por %p153, %p154
      %p157 = scmp.ne.s32.totalorder %s140, %s156
      %p158 = scmp.eq.s32.totalorder %s30, 0
      %p159 = por %p157, %p158
      %p160 = scmp.le.s32.totalorder 1, %s24
      %p161 = scmp.lt.s32.totalorder %s24, 5
      %p162 = pnand %p160, %p161
      %p163 = pneg %p162
      // Predicated region
      $region9: #{multilora_forward.1} parent=5 // pred_check
        _
      $region10: #{multilora_forward.1} parent=5 // pred_check_branch
        %165 = sbr.rel (%p162) target = $region12
      $region11: #{multilora_forward.1} parent=5 // pred_region
        %s166 = ssub.s32 %s24, 1
      $region12: #{multilora_forward.1} parent=5 // pred_fallthru
        _
      %p167 = scmp.lt.s32.totalorder %s24, 4
      // Predicated region
      $region13: #{multilora_forward.1} parent=5 // pred_check
        %p168 = pneg %p167
      $region14: #{multilora_forward.1} parent=5 // pred_check_branch
        %170 = sbr.rel (%p168) target = $region16
      $region15: #{multilora_forward.1} parent=5 // pred_region
        // Predicated region
        $region17: #{multilora_forward.1} parent=15 // pred_check
          %p171 = pneg %p60
        $region18: #{multilora_forward.1} parent=15 // pred_check_branch
          %173 = sbr.rel (%p171) target = $region20
        $region19: #{multilora_forward.1} parent=15 // pred_region
          %s174 = sld [smem:[#allocation3 + %s31]]
          %p175 = scmp.lt.s32.totalorder %s174, 3
          %s176 = scalar_select %p175, %s174, 3
          %p177 = scmp.lt.s32.totalorder %s32, 0
          %s178 = scalar_select %p177, %s32, 0
          %s179 = sadd.s32 %s178, %s176
          %s180 = smul.addr %s179, 8
          %s181 = scalar_lea.vmem %s2, %s180
          %s182 = sld [smem:[#allocation3 + %s31]]
        $region20: #{multilora_forward.1} parent=15 // pred_fallthru
          _
        // Predicated region
        $region21: #{multilora_forward.1} parent=15 // pred_check
          %p183 = pneg %p88
        $region22: #{multilora_forward.1} parent=15 // pred_check_branch
          %185 = sbr.rel (%p183) target = $region24
        $region23: #{multilora_forward.1} parent=15 // pred_region
          %s186 = sld [smem:[#allocation4 + %s31]]
          %p187 = scmp.lt.s32.totalorder %s186, 1
          %s188 = scalar_select %p187, %s186, 1
          %s189 = smul.addr %s188, 4
          %s190 = smul.addr %s189, 4
          %s191 = scalar_lea.vmem %s3, %s190
          %s192 = sld [smem:[#allocation4 + %s31]]
        $region24: #{multilora_forward.1} parent=15 // pred_fallthru
          _
        // Predicated region
        $region25: #{multilora_forward.1} parent=15 // pred_check
          %p193 = pneg %p116
        $region26: #{multilora_forward.1} parent=15 // pred_check_branch
          %195 = sbr.rel (%p193) target = $region28
        $region27: #{multilora_forward.1} parent=15 // pred_region
          %s196 = sld [smem:[#allocation4 + %s31]]
          %p197 = scmp.lt.s32.totalorder %s196, 1
          %s198 = scalar_select %p197, %s196, 1
          %s199 = smul.addr %s198, 16
          %s200 = smul.addr %s199, 4
          %s201 = scalar_lea.vmem %s4, %s200
          %s202 = sld [smem:[#allocation4 + %s31]]
        $region28: #{multilora_forward.1} parent=15 // pred_fallthru
          _
      $region16: #{multilora_forward.1} parent=5 // pred_fallthru
        _
      %p203 = scmp.le.s32.totalorder 1, %s24
      %p204 = scmp.lt.s32.totalorder %s24, 5
      %p205 = pnand %p203, %p204
      %p206 = pneg %p205
      // Predicated region
      $region29: #{multilora_forward.1} parent=5 // pred_check
        _
      $region30: #{multilora_forward.1} parent=5 // pred_check_branch
        %208 = sbr.rel (%p205) target = $region32
      $region31: #{multilora_forward.1} parent=5 // pred_region
        %s209 = ssub.s32 %s24, 1
        %s210 = sld [smem:[#allocation3 + %s33]]
        %p211 = scmp.lt.s32.totalorder %s210, 3
        %s212 = scalar_select %p211, %s210, 3
        %p213 = scmp.lt.s32.totalorder %s34, 0
        %s214 = scalar_select %p213, %s34, 0
        %s215 = sadd.s32 %s214, %s212
        %s216 = smul.addr %s215, 8
        %s217 = scalar_lea.vmem %s2, %s216
        %p218 = pneg %p66
        %p219 = pneg %p63
        %s220 = sld [smem:[#allocation4 + %s33]]
        %p221 = scmp.lt.s32.totalorder %s220, 1
        %s222 = scalar_select %p221, %s220, 1
        %s223 = smul.addr %s222, 4
        %s224 = smul.addr %s223, 4
        %s225 = scalar_lea.vmem %s3, %s224
        %p226 = pneg %p94
        %p227 = pneg %p91
        %s228 = sld [smem:[#allocation4 + %s33]]
        %p229 = scmp.lt.s32.totalorder %s228, 1
        %s230 = scalar_select %p229, %s228, 1
        %s231 = smul.addr %s230, 16
        %s232 = smul.addr %s231, 4
        %s233 = scalar_lea.vmem %s4, %s232
        %p234 = pneg %p122
        %p235 = pneg %p119
        %p236 = pneg %p152
        %p237 = pneg %p149
        %s238 = sand.u32 %s139, 1
        %s239 = scalar_lea.sflag [#allocation6], %s238
        %s240 = sand.u32 %s139, 1
        %s241 = smul.addr %s240, 4
        %s242 = scalar_lea.vmem [#allocation5], %s241
        %s243 = sld [smem:[#allocation3 + %s33]]
        %p244 = scmp.lt.s32.totalorder %s243, 3
        %s245 = scalar_select %p244, %s243, 3
        %p246 = scmp.lt.s32.totalorder %s34, 0
        %s247 = scalar_select %p246, %s34, 0
        %s248 = sadd.s32 %s247, %s245
        %s249 = smul.addr %s248, 8
        %s250 = scalar_lea.vmem %s2, %s249
        %s251 = sld [smem:[#allocation3 + %s33]]
        %s252 = sld [smem:[#allocation4 + %s33]]
        %p253 = scmp.lt.s32.totalorder %s252, 1
        %s254 = scalar_select %p253, %s252, 1
        %s255 = smul.addr %s254, 4
        %s256 = smul.addr %s255, 4
        %s257 = scalar_lea.vmem %s3, %s256
        %s258 = sld [smem:[#allocation4 + %s33]]
        %s259 = sld [smem:[#allocation4 + %s33]]
        %p260 = scmp.lt.s32.totalorder %s259, 1
        %s261 = scalar_select %p260, %s259, 1
        %s262 = smul.addr %s261, 16
        %s263 = smul.addr %s262, 4
        %s264 = scalar_lea.vmem %s4, %s263
        %s265 = sld [smem:[#allocation4 + %s33]]
        %s266 = sld [smem:[#allocation3 + %s33]]
        %v268 = vld [vmem:[%s250] sm:$0xff]
        %v269 = vpack.c.bf16 %v268, %v268
        %v270 = vld [vmem:[%s257] sm:$0xf]
        %v271 = vld [vmem:[%s257 + $0x4] sm:$0xf]
        %v272 = vld [vmem:[%s257 + $0x8] sm:$0xf]
        %v273 = vld [vmem:[%s257 + $0xc] sm:$0xf]
        %v274 = vld [vmem:[%s264] sm:$0xf]
        %v275 = vld [vmem:[%s264 + $0x4] sm:$0xf]
        %v276 = vld [vmem:[%s264 + $0x8] sm:$0xf]
        %v277 = vld [vmem:[%s264 + $0xc] sm:$0xf]
        %v278 = vld [vmem:[%s264 + $0x10] sm:$0xf]
        %v279 = vld [vmem:[%s264 + $0x14] sm:$0xf]
        %v280 = vld [vmem:[%s264 + $0x18] sm:$0xf]
        %v281 = vld [vmem:[%s264 + $0x1c] sm:$0xf]
        %v282 = vld [vmem:[%s264 + $0x20] sm:$0xf]
        %v283 = vld [vmem:[%s264 + $0x24] sm:$0xf]
        %v284 = vld [vmem:[%s264 + $0x28] sm:$0xf]
        %v285 = vld [vmem:[%s264 + $0x2c] sm:$0xf]
        %v286 = vld [vmem:[%s264 + $0x30] sm:$0xf]
        %v287 = vld [vmem:[%s264 + $0x34] sm:$0xf]
        %v288 = vld [vmem:[%s264 + $0x38] sm:$0xf]
        %v289 = vld [vmem:[%s264 + $0x3c] sm:$0xf]
        %v294 = vunpack.c.l.b16 %v270
        %v295 = vunpack.c.l.b16 %v271
        %v296 = vunpack.c.l.b16 %v272
        %v297 = vunpack.c.l.b16 %v273
        %v298 = vpack.c.b16 %v295, %v294
        %v299 = vpack.c.b16 %v297, %v296
        %vm302 = vcmask 261120
        %v304 = vsel %vm302, %v269, 0
        %306 = vmatprep.subr.bf16.mxu0 0
        %307 = vmatpush1.bf16.msra.mxu0 0
        %308 = vmatprep.subr.bf16.mxu0 0
        %309 = vmatpush1.bf16.msra.mxu0 0
        %310 = vmatprep.subr.bf16.mxu0 0
        %311 = vmatpush1.bf16.msra.mxu0 0
        %312 = vmatprep.subr.bf16.mxu0 0
        %313 = vmatpush1.bf16.msra.mxu0 0
        %314 = vmatprep.subr.bf16.mxu0 0
        %315 = vmatpush1.bf16.msra.mxu0 0
        %316 = vmatprep.subr.bf16.mxu0 0
        %317 = vmatpush1.bf16.msra.mxu0 0
        %318 = vmatprep.subr.bf16.mxu0 0
        %319 = vmatpush1.bf16.msra.mxu0 %v299
        %320 = vmatprep.subr.bf16.mxu0 0
        %321 = vmatpush1.bf16.msra.mxu0 %v298
        %322 = vmatprep.subr.bf16.mxu0 0
        %323 = vmatpush2.bf16.msra.mxu0 0
        %324 = vmatprep.subr.bf16.mxu0 0
        %325 = vmatpush2.bf16.msra.mxu0 0
        %326 = vmatprep.subr.bf16.mxu0 0
        %327 = vmatpush2.bf16.msra.mxu0 0
        %328 = vmatprep.subr.bf16.mxu0 0
        %329 = vmatpush2.bf16.msra.mxu0 0
        %330 = vmatprep.subr.bf16.mxu0 0
        %331 = vmatpush2.bf16.msra.mxu0 0
        %332 = vmatprep.subr.bf16.mxu0 0
        %333 = vmatpush2.bf16.msra.mxu0 0
        %334 = vmatprep.subr.bf16.mxu0 0
        %335 = vmatpush2.bf16.msra.mxu0 0
        %336 = vmatprep.subr.bf16.mxu0 0
        %337 = vmatpush2.bf16.msra.mxu0 0
        %338 = vmatprep.mubr.bf16.mxu0 0
        %339 = vmatmul.mubr.bf16.gmra.mxu0 %v304
        %v340 = vpop.f32.mrf.mxu0
        %v341 = vadd.f32 0.0, %v340
        %v342 = vpop.f32.mrf.mxu0
        %v343 = vpop.f32.mrf.mxu0
        %v344 = vpop.f32.mrf.mxu0
        %345 = vdwg.mxu0
        %v346 = vpack.c.bf16 %v341, %v341
        %v363 = vunpack.c.l.b16 %v274
        %v364 = vunpack.c.l.b16 %v275
        %v365 = vunpack.c.l.b16 %v276
        %v366 = vunpack.c.l.b16 %v277
        %v367 = vunpack.c.l.b16 %v278
        %v368 = vunpack.c.l.b16 %v279
        %v369 = vunpack.c.l.b16 %v280
        %v370 = vunpack.c.l.b16 %v281
        %v371 = vunpack.c.l.b16 %v282
        %v372 = vunpack.c.l.b16 %v283
        %v373 = vunpack.c.l.b16 %v284
        %v374 = vunpack.c.l.b16 %v285
        %v375 = vunpack.c.l.b16 %v286
        %v376 = vunpack.c.l.b16 %v287
        %v377 = vunpack.c.l.b16 %v288
        %v378 = vunpack.c.l.b16 %v289
        %v379 = vpack.c.b16 %v364, %v363
        %v380 = vpack.c.b16 %v366, %v365
        %v381 = vpack.c.b16 %v368, %v367
        %v382 = vpack.c.b16 %v370, %v369
        %v383 = vpack.c.b16 %v372, %v371
        %v384 = vpack.c.b16 %v374, %v373
        %v385 = vpack.c.b16 %v376, %v375
        %v386 = vpack.c.b16 %v378, %v377
        %395 = vmatprep.subr.bf16.mxu0 0
        %396 = vmatpush1.bf16.msra.mxu0 %v386
        %397 = vmatprep.subr.bf16.mxu0 0
        %398 = vmatpush1.bf16.msra.mxu0 %v385
        %399 = vmatprep.subr.bf16.mxu0 0
        %400 = vmatpush1.bf16.msra.mxu0 %v384
        %401 = vmatprep.subr.bf16.mxu0 0
        %402 = vmatpush1.bf16.msra.mxu0 %v383
        %403 = vmatprep.subr.bf16.mxu0 0
        %404 = vmatpush1.bf16.msra.mxu0 %v382
        %405 = vmatprep.subr.bf16.mxu0 0
        %406 = vmatpush1.bf16.msra.mxu0 %v381
        %407 = vmatprep.subr.bf16.mxu0 0
        %408 = vmatpush1.bf16.msra.mxu0 %v380
        %409 = vmatprep.subr.bf16.mxu0 0
        %410 = vmatpush1.bf16.msra.mxu0 %v379
        %411 = vmatprep.subr.bf16.mxu0 0
        %412 = vmatpush2.bf16.msra.mxu0 0
        %413 = vmatprep.subr.bf16.mxu0 0
        %414 = vmatpush2.bf16.msra.mxu0 0
        %415 = vmatprep.subr.bf16.mxu0 0
        %416 = vmatpush2.bf16.msra.mxu0 0
        %417 = vmatprep.subr.bf16.mxu0 0
        %418 = vmatpush2.bf16.msra.mxu0 0
        %419 = vmatprep.subr.bf16.mxu0 0
        %420 = vmatpush2.bf16.msra.mxu0 0
        %421 = vmatprep.subr.bf16.mxu0 0
        %422 = vmatpush2.bf16.msra.mxu0 0
        %423 = vmatprep.subr.bf16.mxu0 0
        %424 = vmatpush2.bf16.msra.mxu0 0
        %425 = vmatprep.subr.bf16.mxu0 0
        %426 = vmatpush2.bf16.msra.mxu0 0
        %427 = vmatprep.mubr.bf16.mxu0 0
        %428 = vmatmul.mubr.bf16.gmra.mxu0 %v346
        %v429 = vpop.f32.mrf.mxu0
        %v430 = vadd.f32 0.0, %v429
        %v431 = vpop.f32.mrf.mxu0
        %v432 = vpop.f32.mrf.mxu0
        %v433 = vpop.f32.mrf.mxu0
        %434 = vdwg.mxu0
        %v435 = vpack.c.bf16 %v430, %v430
        %vm436 = vcmask 257024
        %437 = vst.msk [vmem:[%s242] sm:$0xf] %vm436, %v435
        %s438 = sand.u32 %s139, 1
        %s439 = scalar_lea.sflag [#allocation6], %s438
        %s440 = sand.u32 %s139, 1
        %s441 = smul.addr %s440, 4
        %s442 = scalar_lea.vmem [#allocation5], %s441
        // Predicated region
        $region33: #{multilora_forward.1} parent=31 // pred_check
          %p443 = pneg %p149
        $region34: #{multilora_forward.1} parent=31 // pred_check_branch
          %445 = sbr.rel (%p443) target = $region36
        $region35: #{multilora_forward.1} parent=31 // pred_region
          %s446 = sld [smem:[#allocation3 + %s33]]
          %s448 = ssub.s32 64, 64
          %449 = vsyncadd %s439, %s448
          %s450 = sadd.s32 %s34, %s446
          %s451 = smul.addr %s450, 64
          %s452 = scalar_lea.hbm %s5, %s451
          %s454 = sshll.u32 %s442, 4
          %s455 = int_to_ptr.vmem [resolvable:$true] %s454
          %457 = dma.vmem_to_hbm [thread:$0]  %s455, 64, %s452, %s439
        $region36: #{multilora_forward.1} parent=31 // pred_fallthru
          _
      $region32: #{multilora_forward.1} parent=5 // pred_fallthru
        _
      %p458 = scmp.le.s32.totalorder 2, %s24
      // Predicated region
      $region37: #{multilora_forward.1} parent=5 // pred_check
        %p459 = pneg %p458
      $region38: #{multilora_forward.1} parent=5 // pred_check_branch
        %461 = sbr.rel (%p459) target = $region40
      $region39: #{multilora_forward.1} parent=5 // pred_region
        %s462 = ssub.s32 %s24, 2
        // Predicated region
        $region41: #{multilora_forward.1} parent=39 // pred_check
          %p463 = pneg %p155
        $region42: #{multilora_forward.1} parent=39 // pred_check_branch
          %465 = sbr.rel (%p463) target = $region44
        $region43: #{multilora_forward.1} parent=39 // pred_region
          %s466 = sand.u32 %s140, 1
          %s467 = scalar_lea.sflag [#allocation6], %s466
          %s468 = sand.u32 %s140, 1
          %s469 = smul.addr %s468, 4
          %s470 = scalar_lea.vmem [#allocation5], %s469
          %471 = dma.done %s467, 64
        $region44: #{multilora_forward.1} parent=39 // pred_fallthru
          _
      $region40: #{multilora_forward.1} parent=5 // pred_fallthru
        _
    $region6: #{multilora_forward.1} parent=1 // loop_footer
      %s28 = sadd.s32 1, %s24
    $region7: #{multilora_forward.1} parent=1 // loop_footer_branch
      %23 = sbr.rel target = $region3
    $region8: #{multilora_forward.1} parent=1 // loop_exit
      _
    %472 = vsyncpa [#allocation6], 1
    %s473 = scalar_lea.sflag [#allocation6], 1
    %474 = vsyncpa %s473, 1

</llo_original>
